<compile_context>
chip_gen: v5e
topology: v5e:2x2
jax: 0.10.0
libtpu: 0.0.40
codegen_flags: <defaults>
</compile_context>

<pallas_src>
import numpy as np
import jax
import jax.numpy as jnp
from jax import lax
from jax.experimental import pallas as pl
from jax.experimental.pallas import tpu as pltpu


def _gru_kernel(len_ref, gi_ref, h0_ref, whh_ref, bhn_ref, out_ref, hT_ref):
    """One grid step = one batch tile; the full time recurrence runs inside."""
    T = gi_ref.shape[0]
    Bt, H = hT_ref.shape

    len_col = len_ref[...]                                  # (Bt, 1) int32
    w_hh = whh_ref[...]                                     # (H, 3H) f32
    # Hoist the (1,H)->(Bt,H) broadcast out of the loop (no CSE for bcast).
    b_hn = jnp.broadcast_to(bhn_ref[...], (Bt, H))          # (Bt, H) f32
    h0 = h0_ref[...].astype(jnp.float32)                    # (Bt, H) f32

    def step(t, h_prev):
        # gi already contains x @ W_ih^T + b_ih + b_hh[r,z]  (hoisted GEMM).
        gi = gi_ref[t]                                      # (Bt, 3H) f32
        gh = jnp.dot(h_prev, w_hh, preferred_element_type=jnp.float32)
        r = jax.nn.sigmoid(gi[:, 0:H] + gh[:, 0:H])
        z = jax.nn.sigmoid(gi[:, H:2 * H] + gh[:, H:2 * H])
        n = jnp.tanh(gi[:, 2 * H:] + r * (gh[:, 2 * H:] + b_hn))
        h_new = (1.0 - z) * n + z * h_prev                  # (Bt, H)
        # Packed-sequence masking: only update while t < length[b].
        mask = t < len_col                                  # (Bt, 1) bool
        out_ref[t] = jnp.where(mask, h_new, 0.0).astype(out_ref.dtype)
        return jnp.where(mask, h_new, h_prev)

    h_final = lax.fori_loop(0, T, step, h0, unroll=True)
    hT_ref[...] = h_final.astype(hT_ref.dtype)


def gru_forward_pallas(x_tm, lengths, h0, w_ih_t, w_hh_t, b_ih, b_hh):
    """x_tm: (T, B, D) f32 time-major, lengths: (B,) int32, h0: (B, H) f32.
    w_ih_t: (D, 3H), w_hh_t: (H, 3H), b_ih/b_hh: (1, 3H).
    Returns (output_tm: (T, B, H), h_final: (B, H))."""
    T, B, D = x_tm.shape
    H = h0.shape[-1]

    # Hoisted input projection: one MXU-friendly (T*B, D) x (D, 3H) GEMM,
    # with b_ih (all gates) and b_hh (r, z gates) folded in.  Only b_hh_n
    # stays in the recurrence (it lives inside the r * (...) term).
    bias = b_ih + jnp.concatenate(
        [b_hh[:, :2 * H], jnp.zeros((1, H), b_hh.dtype)], axis=1)
    gi_all = (x_tm.reshape(T * B, D) @ w_ih_t + bias).reshape(T, B, 3 * H)
    gi_all = gi_all.astype(jnp.float32)
    b_hn = b_hh[:, 2 * H:]                                   # (1, H)
    len_col = lengths.astype(jnp.int32).reshape(B, 1)

    # Batch-tile grid: rows are independent -> "parallel" (lets v7x megacore
    # shard the batch). Time is fully serial inside the kernel body.
    b_tile = B // 2 if (B % 16 == 0) else B
    n_btiles = B // b_tile
    # NOTE: at real sizes, stream gi/out in time chunks sized for VMEM
    # (64 MiB on v7x); full residency is fine at these toy shapes.

    out_tm, h_final = pl.pallas_call(
        _gru_kernel,
        out_shape=(
            jax.ShapeDtypeStruct((T, B, H), jnp.float32),
            jax.ShapeDtypeStruct((B, H), jnp.float32),
        ),
        grid_spec=pltpu.PrefetchScalarGridSpec(
            num_scalar_prefetch=0,
            grid=(n_btiles,),
            in_specs=[
                pl.BlockSpec((b_tile, 1), lambda b: (b, 0)),           # lengths
                pl.BlockSpec((T, b_tile, 3 * H), lambda b: (0, b, 0)),  # gi (hoisted)
                pl.BlockSpec((b_tile, H), lambda b: (b, 0)),            # h0
                pl.BlockSpec((H, 3 * H), lambda b: (0, 0)),             # W_hh^T
                pl.BlockSpec((1, H), lambda b: (0, 0)),                 # b_hh (n gate)
            ],
            out_specs=[
                pl.BlockSpec((T, b_tile, H), lambda b: (0, b, 0)),      # per-step out
                pl.BlockSpec((b_tile, H), lambda b: (b, 0)),            # final hidden
            ],
        ),
        compiler_params=pltpu.CompilerParams(
            dimension_semantics=("parallel",)),
    )(len_col, gi_all, h0, w_hh_t, b_hn)
    return out_tm, h_final


class EncoderRNNPallas:
    """JAX/Pallas port of the PyTorch EncoderRNN forward pass."""

    def __init__(self, input_size, vocab_size, hidden_size, key):
        self.input_size = input_size
        self.vocab_size = vocab_size
        self.hidden_size = hidden_size
        k_emb, k1, k2, k3, k4 = jax.random.split(key, 5)
        bound = 1.0 / jnp.sqrt(hidden_size)
        # Frozen "pretrained" embedding (deterministic synthetic init).
        self.emb = jax.random.normal(k_emb, (vocab_size, input_size), jnp.float32)
        # nn.GRU parameters (gate order r, z, n), stored transposed for matmul.
        self.w_ih_t = jax.random.uniform(k1, (input_size, 3 * hidden_size),
                                         jnp.float32, -bound, bound)
        self.w_hh_t = jax.random.uniform(k2, (hidden_size, 3 * hidden_size),
                                         jnp.float32, -bound, bound)
        self.b_ih = jax.random.uniform(k3, (1, 3 * hidden_size),
                                       jnp.float32, -bound, bound)
        self.b_hh = jax.random.uniform(k4, (1, 3 * hidden_size),
                                       jnp.float32, -bound, bound)

    def init_hidden(self, batch_size):
        return jnp.zeros((1, batch_size, self.hidden_size), jnp.float32)

    def forward(self, tokens, input_lengths, hidden):
        """tokens: (B, T) int32; input_lengths: host-side ints, sorted
        descending (same contract as pack_padded_sequence); hidden: (1, B, H).
        Returns (output (B, Tmax, H), hidden (1, B, H))."""
        # Lengths are host-side (like PyTorch's CPU lengths) -> static Tmax,
        # no tracer->int conversion, and fully-padded tail steps are skipped.
        lengths_np = np.asarray(jax.device_get(input_lengths)).astype(np.int32)
        t_max = int(lengths_np.max())
        # Embedding lookup (gather) stays in plain JAX glue.
        embedded = jnp.take(self.emb, tokens[:, :t_max], axis=0)   # (B, Tmax, D)
        x_tm = jnp.transpose(embedded, (1, 0, 2))                  # (Tmax, B, D)
        out_tm, h_final = gru_forward_pallas(
            x_tm, jnp.asarray(lengths_np), hidden[0],
            self.w_ih_t, self.w_hh_t, self.b_ih, self.b_hh)
        output = jnp.transpose(out_tm, (1, 0, 2))                  # (B, Tmax, H)
        return output, h_final[None]


def _gru_reference(x_tm, lengths, h0, w_ih_t, w_hh_t, b_ih, b_hh):
    """Pure-JAX reference of the masked GRU, for a correctness check."""
    T, B, D = x_tm.shape
    H = h0.shape[-1]
    h = h0
    outs = []
    for t in range(T):
        gi = x_tm[t] @ w_ih_t + b_ih
        gh = h @ w_hh_t + b_hh
        r = jax.nn.sigmoid(gi[:, :H] + gh[:, :H])
        z = jax.nn.sigmoid(gi[:, H:2 * H] + gh[:, H:2 * H])
        n = jnp.tanh(gi[:, 2 * H:] + r * gh[:, 2 * H:])
        h_new = (1 - z) * n + z * h
        mask = (t < lengths)[:, None]
        h = jnp.where(mask, h_new, h)
        outs.append(jnp.where(mask, h_new, 0.0))
    return jnp.stack(outs, 0), h


if __name__ == "__main__":
    # Small shapes consistent with the module's forward.
    batch = 8
    seq = 8
    input_size = 16     # embedding dim
    vocab_size = 50
    hidden_size = 32

    key = jax.random.PRNGKey(0)
    k_params, k_tok = jax.random.split(key)

    enc = EncoderRNNPallas(input_size, vocab_size, hidden_size, k_params)

    tokens = jax.random.randint(k_tok, (batch, seq), 0, vocab_size, jnp.int32)
    # Lengths sorted descending (pack_padded_sequence requirement).
    lengths = np.array([8, 7, 6, 5, 5, 3, 2, 1], dtype=np.int32)
    hidden0 = enc.init_hidden(batch)

    output, hidden = enc.forward(tokens, lengths, hidden0)
    output = jax.block_until_ready(output)
    hidden = jax.block_until_ready(hidden)

    # Correctness check against a pure-JAX reference.
    t_max = int(lengths.max())
    embedded = jnp.take(enc.emb, tokens, axis=0)
    x_tm = jnp.transpose(embedded, (1, 0, 2))
    ref_out_tm, ref_h = _gru_reference(
        x_tm, jnp.asarray(lengths), hidden0[0],
        enc.w_ih_t, enc.w_hh_t, enc.b_ih, enc.b_hh)
    ref_out = jnp.transpose(ref_out_tm, (1, 0, 2))[:, :t_max, :]

    assert output.shape == (batch, t_max, hidden_size)
    assert hidden.shape == (1, batch, hidden_size)
    assert jnp.allclose(output, ref_out, atol=1e-5, rtol=1e-5)
    assert jnp.allclose(hidden[0], ref_h, atol=1e-5, rtol=1e-5)

    print("KERNEL_OK")
</pallas_src>

<mosaic_0001>
module attributes {stable_mosaic.version = 11 : i64} {
  func.func @_gru_kernel(%arg0: i32, %arg1: memref<8x1xi32, #tpu.memory_space<vmem>>, %arg2: memref<8x8x96xf32, #tpu.memory_space<vmem>>, %arg3: memref<8x32xf32, #tpu.memory_space<vmem>>, %arg4: memref<32x96xf32, #tpu.memory_space<vmem>>, %arg5: memref<1x32xf32, #tpu.memory_space<vmem>>, %arg6: memref<8x8x32xf32, #tpu.memory_space<vmem>>, %arg7: memref<8x32xf32, #tpu.memory_space<vmem>>) attributes {dimension_semantics = [#tpu.dimension_semantics<parallel>], iteration_bounds = array<i64: 1>, scalar_prefetch = 0 : i64, scratch_operands = 0 : i64, tpu.core_type = #tpu.core_type<tc>, window_params = [{transform_indices = @transform_0, window_bounds = array<i64: 8, 1>}, {transform_indices = @transform_1, window_bounds = array<i64: 8, 8, 96>}, {transform_indices = @transform_2, window_bounds = array<i64: 8, 32>}, {pipeline_mode = #tpu.pipeline_mode<synchronous>, transform_indices = @transform_3, window_bounds = array<i64: 32, 96>}, {pipeline_mode = #tpu.pipeline_mode<synchronous>, transform_indices = @transform_4, window_bounds = array<i64: 1, 32>}, {transform_indices = @transform_5, window_bounds = array<i64: 8, 8, 32>}, {transform_indices = @transform_6, window_bounds = array<i64: 8, 32>}]} {
    %c0 = arith.constant 0 : index
    %c0_0 = arith.constant 0 : index
    %0 = vector.load %arg1[%c0, %c0_0] : memref<8x1xi32, #tpu.memory_space<vmem>>, vector<8x1xi32>
    %c0_1 = arith.constant 0 : index
    %c0_2 = arith.constant 0 : index
    %1 = vector.load %arg4[%c0_1, %c0_2] : memref<32x96xf32, #tpu.memory_space<vmem>>, vector<32x96xf32>
    %c0_3 = arith.constant 0 : index
    %c0_4 = arith.constant 0 : index
    %2 = vector.load %arg5[%c0_3, %c0_4] : memref<1x32xf32, #tpu.memory_space<vmem>>, vector<1x32xf32>
    %3 = vector.shape_cast %2 : vector<1x32xf32> to vector<1x32xf32>
    %4 = vector.broadcast %3 : vector<1x32xf32> to vector<8x32xf32>
    %c0_5 = arith.constant 0 : index
    %c0_6 = arith.constant 0 : index
    %5 = vector.load %arg3[%c0_5, %c0_6] : memref<8x32xf32, #tpu.memory_space<vmem>>, vector<8x32xf32>
    %c0_i32 = arith.constant 0 : i32
    %6 = arith.index_cast %c0_i32 : i32 to index
    %c0_7 = arith.constant 0 : index
    %c0_8 = arith.constant 0 : index
    %7 = vector.load %arg2[%6, %c0_7, %c0_8] : memref<8x8x96xf32, #tpu.memory_space<vmem>>, vector<1x8x96xf32>
    %8 = vector.shape_cast %7 : vector<1x8x96xf32> to vector<8x96xf32>
    %cst = arith.constant dense<0.000000e+00> : vector<8x96xf32>
    %9 = tpu.matmul %5, %1, %cst {dimension_numbers = #tpu.dot_dimension_numbers<[1], [0], [0], [1], [0, 0, 1, 1], [], []>} : vector<8x32xf32>, vector<32x96xf32>, vector<8x96xf32> -> vector<8x96xf32>
    %10 = vector.extract_strided_slice %8 {offsets = [0, 0], sizes = [8, 32], strides = [1, 1]} : vector<8x96xf32> to vector<8x32xf32>
    %11 = vector.extract_strided_slice %9 {offsets = [0, 0], sizes = [8, 32], strides = [1, 1]} : vector<8x96xf32> to vector<8x32xf32>
    %12 = arith.addf %10, %11 : vector<8x32xf32>
    %13 = arith.negf %12 : vector<8x32xf32>
    %14 = math.exp %13 : vector<8x32xf32>
    %cst_9 = arith.constant 1.000000e+00 : f32
    %15 = vector.broadcast %cst_9 : f32 to vector<8x32xf32>
    %16 = arith.addf %15, %14 : vector<8x32xf32>
    %17 = arith.divf %15, %16 : vector<8x32xf32>
    %18 = vector.extract_strided_slice %8 {offsets = [0, 32], sizes = [8, 32], strides = [1, 1]} : vector<8x96xf32> to vector<8x32xf32>
    %19 = vector.extract_strided_slice %9 {offsets = [0, 32], sizes = [8, 32], strides = [1, 1]} : vector<8x96xf32> to vector<8x32xf32>
    %20 = arith.addf %18, %19 : vector<8x32xf32>
    %21 = arith.negf %20 : vector<8x32xf32>
    %22 = math.exp %21 : vector<8x32xf32>
    %cst_10 = arith.constant 1.000000e+00 : f32
    %23 = vector.broadcast %cst_10 : f32 to vector<8x32xf32>
    %24 = arith.addf %23, %22 : vector<8x32xf32>
    %25 = arith.divf %23, %24 : vector<8x32xf32>
    %26 = vector.extract_strided_slice %8 {offsets = [0, 64], sizes = [8, 32], strides = [1, 1]} : vector<8x96xf32> to vector<8x32xf32>
    %27 = vector.extract_strided_slice %9 {offsets = [0, 64], sizes = [8, 32], strides = [1, 1]} : vector<8x96xf32> to vector<8x32xf32>
    %28 = arith.addf %27, %4 : vector<8x32xf32>
    %29 = arith.mulf %17, %28 : vector<8x32xf32>
    %30 = arith.addf %26, %29 : vector<8x32xf32>
    %31 = math.tanh %30 : vector<8x32xf32>
    %cst_11 = arith.constant 1.000000e+00 : f32
    %32 = vector.broadcast %cst_11 : f32 to vector<8x32xf32>
    %33 = arith.subf %32, %25 : vector<8x32xf32>
    %34 = arith.mulf %33, %31 : vector<8x32xf32>
    %35 = arith.mulf %25, %5 : vector<8x32xf32>
    %36 = arith.addf %34, %35 : vector<8x32xf32>
    %37 = vector.broadcast %c0_i32 : i32 to vector<8x1xi32>
    %38 = arith.cmpi slt, %37, %0 : vector<8x1xi32>
    %cst_12 = arith.constant 0.000000e+00 : f32
    %39 = vector.shape_cast %38 : vector<8x1xi1> to vector<8x1xi1>
    %40 = vector.broadcast %39 : vector<8x1xi1> to vector<8x32xi1>
    %41 = vector.broadcast %cst_12 : f32 to vector<8x32xf32>
    %42 = arith.select %40, %36, %41 : vector<8x32xi1>, vector<8x32xf32>
    %43 = arith.index_cast %c0_i32 : i32 to index
    %c0_13 = arith.constant 0 : index
    %c0_14 = arith.constant 0 : index
    %44 = vector.load %arg6[%43, %c0_13, %c0_14] : memref<8x8x32xf32, #tpu.memory_space<vmem>>, vector<1x8x32xf32>
    %45 = vector.shape_cast %44 : vector<1x8x32xf32> to vector<8x32xf32>
    %46 = vector.shape_cast %42 : vector<8x32xf32> to vector<1x8x32xf32>
    tpu.vector_store %arg6[%43, %c0_13, %c0_14], %46 {strides = array<i32>} : memref<8x8x32xf32, #tpu.memory_space<vmem>>, vector<1x8x32xf32>,
    %47 = vector.shape_cast %38 : vector<8x1xi1> to vector<8x1xi1>
    %48 = vector.broadcast %47 : vector<8x1xi1> to vector<8x32xi1>
    %49 = arith.select %48, %36, %5 : vector<8x32xi1>, vector<8x32xf32>
    %c1_i32 = arith.constant 1 : i32
    %50 = arith.index_cast %c1_i32 : i32 to index
    %c0_15 = arith.constant 0 : index
    %c0_16 = arith.constant 0 : index
    %51 = vector.load %arg2[%50, %c0_15, %c0_16] : memref<8x8x96xf32, #tpu.memory_space<vmem>>, vector<1x8x96xf32>
    %52 = vector.shape_cast %51 : vector<1x8x96xf32> to vector<8x96xf32>
    %cst_17 = arith.constant dense<0.000000e+00> : vector<8x96xf32>
    %53 = tpu.matmul %49, %1, %cst_17 {dimension_numbers = #tpu.dot_dimension_numbers<[1], [0], [0], [1], [0, 0, 1, 1], [], []>} : vector<8x32xf32>, vector<32x96xf32>, vector<8x96xf32> -> vector<8x96xf32>
    %54 = vector.extract_strided_slice %52 {offsets = [0, 0], sizes = [8, 32], strides = [1, 1]} : vector<8x96xf32> to vector<8x32xf32>
    %55 = vector.extract_strided_slice %53 {offsets = [0, 0], sizes = [8, 32], strides = [1, 1]} : vector<8x96xf32> to vector<8x32xf32>
    %56 = arith.addf %54, %55 : vector<8x32xf32>
    %57 = arith.negf %56 : vector<8x32xf32>
    %58 = math.exp %57 : vector<8x32xf32>
    %cst_18 = arith.constant 1.000000e+00 : f32
    %59 = vector.broadcast %cst_18 : f32 to vector<8x32xf32>
    %60 = arith.addf %59, %58 : vector<8x32xf32>
    %61 = arith.divf %59, %60 : vector<8x32xf32>
    %62 = vector.extract_strided_slice %52 {offsets = [0, 32], sizes = [8, 32], strides = [1, 1]} : vector<8x96xf32> to vector<8x32xf32>
    %63 = vector.extract_strided_slice %53 {offsets = [0, 32], sizes = [8, 32], strides = [1, 1]} : vector<8x96xf32> to vector<8x32xf32>
    %64 = arith.addf %62, %63 : vector<8x32xf32>
    %65 = arith.negf %64 : vector<8x32xf32>
    %66 = math.exp %65 : vector<8x32xf32>
    %cst_19 = arith.constant 1.000000e+00 : f32
    %67 = vector.broadcast %cst_19 : f32 to vector<8x32xf32>
    %68 = arith.addf %67, %66 : vector<8x32xf32>
    %69 = arith.divf %67, %68 : vector<8x32xf32>
    %70 = vector.extract_strided_slice %52 {offsets = [0, 64], sizes = [8, 32], strides = [1, 1]} : vector<8x96xf32> to vector<8x32xf32>
    %71 = vector.extract_strided_slice %53 {offsets = [0, 64], sizes = [8, 32], strides = [1, 1]} : vector<8x96xf32> to vector<8x32xf32>
    %72 = arith.addf %71, %4 : vector<8x32xf32>
    %73 = arith.mulf %61, %72 : vector<8x32xf32>
    %74 = arith.addf %70, %73 : vector<8x32xf32>
    %75 = math.tanh %74 : vector<8x32xf32>
    %cst_20 = arith.constant 1.000000e+00 : f32
    %76 = vector.broadcast %cst_20 : f32 to vector<8x32xf32>
    %77 = arith.subf %76, %69 : vector<8x32xf32>
    %78 = arith.mulf %77, %75 : vector<8x32xf32>
    %79 = arith.mulf %69, %49 : vector<8x32xf32>
    %80 = arith.addf %78, %79 : vector<8x32xf32>
    %81 = vector.broadcast %c1_i32 : i32 to vector<8x1xi32>
    %82 = arith.cmpi slt, %81, %0 : vector<8x1xi32>
    %cst_21 = arith.constant 0.000000e+00 : f32
    %83 = vector.shape_cast %82 : vector<8x1xi1> to vector<8x1xi1>
    %84 = vector.broadcast %83 : vector<8x1xi1> to vector<8x32xi1>
    %85 = vector.broadcast %cst_21 : f32 to vector<8x32xf32>
    %86 = arith.select %84, %80, %85 : vector<8x32xi1>, vector<8x32xf32>
    %87 = arith.index_cast %c1_i32 : i32 to index
    %c0_22 = arith.constant 0 : index
    %c0_23 = arith.constant 0 : index
    %88 = vector.load %arg6[%87, %c0_22, %c0_23] : memref<8x8x32xf32, #tpu.memory_space<vmem>>, vector<1x8x32xf32>
    %89 = vector.shape_cast %88 : vector<1x8x32xf32> to vector<8x32xf32>
    %90 = vector.shape_cast %86 : vector<8x32xf32> to vector<1x8x32xf32>
    tpu.vector_store %arg6[%87, %c0_22, %c0_23], %90 {strides = array<i32>} : memref<8x8x32xf32, #tpu.memory_space<vmem>>, vector<1x8x32xf32>,
    %91 = vector.shape_cast %82 : vector<8x1xi1> to vector<8x1xi1>
    %92 = vector.broadcast %91 : vector<8x1xi1> to vector<8x32xi1>
    %93 = arith.select %92, %80, %49 : vector<8x32xi1>, vector<8x32xf32>
    %c2_i32 = arith.constant 2 : i32
    %94 = arith.index_cast %c2_i32 : i32 to index
    %c0_24 = arith.constant 0 : index
    %c0_25 = arith.constant 0 : index
    %95 = vector.load %arg2[%94, %c0_24, %c0_25] : memref<8x8x96xf32, #tpu.memory_space<vmem>>, vector<1x8x96xf32>
    %96 = vector.shape_cast %95 : vector<1x8x96xf32> to vector<8x96xf32>
    %cst_26 = arith.constant dense<0.000000e+00> : vector<8x96xf32>
    %97 = tpu.matmul %93, %1, %cst_26 {dimension_numbers = #tpu.dot_dimension_numbers<[1], [0], [0], [1], [0, 0, 1, 1], [], []>} : vector<8x32xf32>, vector<32x96xf32>, vector<8x96xf32> -> vector<8x96xf32>
    %98 = vector.extract_strided_slice %96 {offsets = [0, 0], sizes = [8, 32], strides = [1, 1]} : vector<8x96xf32> to vector<8x32xf32>
    %99 = vector.extract_strided_slice %97 {offsets = [0, 0], sizes = [8, 32], strides = [1, 1]} : vector<8x96xf32> to vector<8x32xf32>
    %100 = arith.addf %98, %99 : vector<8x32xf32>
    %101 = arith.negf %100 : vector<8x32xf32>
    %102 = math.exp %101 : vector<8x32xf32>
    %cst_27 = arith.constant 1.000000e+00 : f32
    %103 = vector.broadcast %cst_27 : f32 to vector<8x32xf32>
    %104 = arith.addf %103, %102 : vector<8x32xf32>
    %105 = arith.divf %103, %104 : vector<8x32xf32>
    %106 = vector.extract_strided_slice %96 {offsets = [0, 32], sizes = [8, 32], strides = [1, 1]} : vector<8x96xf32> to vector<8x32xf32>
    %107 = vector.extract_strided_slice %97 {offsets = [0, 32], sizes = [8, 32], strides = [1, 1]} : vector<8x96xf32> to vector<8x32xf32>
    %108 = arith.addf %106, %107 : vector<8x32xf32>
    %109 = arith.negf %108 : vector<8x32xf32>
    %110 = math.exp %109 : vector<8x32xf32>
    %cst_28 = arith.constant 1.000000e+00 : f32
    %111 = vector.broadcast %cst_28 : f32 to vector<8x32xf32>
    %112 = arith.addf %111, %110 : vector<8x32xf32>
    %113 = arith.divf %111, %112 : vector<8x32xf32>
    %114 = vector.extract_strided_slice %96 {offsets = [0, 64], sizes = [8, 32], strides = [1, 1]} : vector<8x96xf32> to vector<8x32xf32>
    %115 = vector.extract_strided_slice %97 {offsets = [0, 64], sizes = [8, 32], strides = [1, 1]} : vector<8x96xf32> to vector<8x32xf32>
    %116 = arith.addf %115, %4 : vector<8x32xf32>
    %117 = arith.mulf %105, %116 : vector<8x32xf32>
    %118 = arith.addf %114, %117 : vector<8x32xf32>
    %119 = math.tanh %118 : vector<8x32xf32>
    %cst_29 = arith.constant 1.000000e+00 : f32
    %120 = vector.broadcast %cst_29 : f32 to vector<8x32xf32>
    %121 = arith.subf %120, %113 : vector<8x32xf32>
    %122 = arith.mulf %121, %119 : vector<8x32xf32>
    %123 = arith.mulf %113, %93 : vector<8x32xf32>
    %124 = arith.addf %122, %123 : vector<8x32xf32>
    %125 = vector.broadcast %c2_i32 : i32 to vector<8x1xi32>
    %126 = arith.cmpi slt, %125, %0 : vector<8x1xi32>
    %cst_30 = arith.constant 0.000000e+00 : f32
    %127 = vector.shape_cast %126 : vector<8x1xi1> to vector<8x1xi1>
    %128 = vector.broadcast %127 : vector<8x1xi1> to vector<8x32xi1>
    %129 = vector.broadcast %cst_30 : f32 to vector<8x32xf32>
    %130 = arith.select %128, %124, %129 : vector<8x32xi1>, vector<8x32xf32>
    %131 = arith.index_cast %c2_i32 : i32 to index
    %c0_31 = arith.constant 0 : index
    %c0_32 = arith.constant 0 : index
    %132 = vector.load %arg6[%131, %c0_31, %c0_32] : memref<8x8x32xf32, #tpu.memory_space<vmem>>, vector<1x8x32xf32>
    %133 = vector.shape_cast %132 : vector<1x8x32xf32> to vector<8x32xf32>
    %134 = vector.shape_cast %130 : vector<8x32xf32> to vector<1x8x32xf32>
    tpu.vector_store %arg6[%131, %c0_31, %c0_32], %134 {strides = array<i32>} : memref<8x8x32xf32, #tpu.memory_space<vmem>>, vector<1x8x32xf32>,
    %135 = vector.shape_cast %126 : vector<8x1xi1> to vector<8x1xi1>
    %136 = vector.broadcast %135 : vector<8x1xi1> to vector<8x32xi1>
    %137 = arith.select %136, %124, %93 : vector<8x32xi1>, vector<8x32xf32>
    %c3_i32 = arith.constant 3 : i32
    %138 = arith.index_cast %c3_i32 : i32 to index
    %c0_33 = arith.constant 0 : index
    %c0_34 = arith.constant 0 : index
    %139 = vector.load %arg2[%138, %c0_33, %c0_34] : memref<8x8x96xf32, #tpu.memory_space<vmem>>, vector<1x8x96xf32>
    %140 = vector.shape_cast %139 : vector<1x8x96xf32> to vector<8x96xf32>
    %cst_35 = arith.constant dense<0.000000e+00> : vector<8x96xf32>
    %141 = tpu.matmul %137, %1, %cst_35 {dimension_numbers = #tpu.dot_dimension_numbers<[1], [0], [0], [1], [0, 0, 1, 1], [], []>} : vector<8x32xf32>, vector<32x96xf32>, vector<8x96xf32> -> vector<8x96xf32>
    %142 = vector.extract_strided_slice %140 {offsets = [0, 0], sizes = [8, 32], strides = [1, 1]} : vector<8x96xf32> to vector<8x32xf32>
    %143 = vector.extract_strided_slice %141 {offsets = [0, 0], sizes = [8, 32], strides = [1, 1]} : vector<8x96xf32> to vector<8x32xf32>
    %144 = arith.addf %142, %143 : vector<8x32xf32>
    %145 = arith.negf %144 : vector<8x32xf32>
    %146 = math.exp %145 : vector<8x32xf32>
    %cst_36 = arith.constant 1.000000e+00 : f32
    %147 = vector.broadcast %cst_36 : f32 to vector<8x32xf32>
    %148 = arith.addf %147, %146 : vector<8x32xf32>
    %149 = arith.divf %147, %148 : vector<8x32xf32>
    %150 = vector.extract_strided_slice %140 {offsets = [0, 32], sizes = [8, 32], strides = [1, 1]} : vector<8x96xf32> to vector<8x32xf32>
    %151 = vector.extract_strided_slice %141 {offsets = [0, 32], sizes = [8, 32], strides = [1, 1]} : vector<8x96xf32> to vector<8x32xf32>
    %152 = arith.addf %150, %151 : vector<8x32xf32>
    %153 = arith.negf %152 : vector<8x32xf32>
    %154 = math.exp %153 : vector<8x32xf32>
    %cst_37 = arith.constant 1.000000e+00 : f32
    %155 = vector.broadcast %cst_37 : f32 to vector<8x32xf32>
    %156 = arith.addf %155, %154 : vector<8x32xf32>
    %157 = arith.divf %155, %156 : vector<8x32xf32>
    %158 = vector.extract_strided_slice %140 {offsets = [0, 64], sizes = [8, 32], strides = [1, 1]} : vector<8x96xf32> to vector<8x32xf32>
    %159 = vector.extract_strided_slice %141 {offsets = [0, 64], sizes = [8, 32], strides = [1, 1]} : vector<8x96xf32> to vector<8x32xf32>
    %160 = arith.addf %159, %4 : vector<8x32xf32>
    %161 = arith.mulf %149, %160 : vector<8x32xf32>
    %162 = arith.addf %158, %161 : vector<8x32xf32>
    %163 = math.tanh %162 : vector<8x32xf32>
    %cst_38 = arith.constant 1.000000e+00 : f32
    %164 = vector.broadcast %cst_38 : f32 to vector<8x32xf32>
    %165 = arith.subf %164, %157 : vector<8x32xf32>
    %166 = arith.mulf %165, %163 : vector<8x32xf32>
    %167 = arith.mulf %157, %137 : vector<8x32xf32>
    %168 = arith.addf %166, %167 : vector<8x32xf32>
    %169 = vector.broadcast %c3_i32 : i32 to vector<8x1xi32>
    %170 = arith.cmpi slt, %169, %0 : vector<8x1xi32>
    %cst_39 = arith.constant 0.000000e+00 : f32
    %171 = vector.shape_cast %170 : vector<8x1xi1> to vector<8x1xi1>
    %172 = vector.broadcast %171 : vector<8x1xi1> to vector<8x32xi1>
    %173 = vector.broadcast %cst_39 : f32 to vector<8x32xf32>
    %174 = arith.select %172, %168, %173 : vector<8x32xi1>, vector<8x32xf32>
    %175 = arith.index_cast %c3_i32 : i32 to index
    %c0_40 = arith.constant 0 : index
    %c0_41 = arith.constant 0 : index
    %176 = vector.load %arg6[%175, %c0_40, %c0_41] : memref<8x8x32xf32, #tpu.memory_space<vmem>>, vector<1x8x32xf32>
    %177 = vector.shape_cast %176 : vector<1x8x32xf32> to vector<8x32xf32>
    %178 = vector.shape_cast %174 : vector<8x32xf32> to vector<1x8x32xf32>
    tpu.vector_store %arg6[%175, %c0_40, %c0_41], %178 {strides = array<i32>} : memref<8x8x32xf32, #tpu.memory_space<vmem>>, vector<1x8x32xf32>,
    %179 = vector.shape_cast %170 : vector<8x1xi1> to vector<8x1xi1>
    %180 = vector.broadcast %179 : vector<8x1xi1> to vector<8x32xi1>
    %181 = arith.select %180, %168, %137 : vector<8x32xi1>, vector<8x32xf32>
    %c4_i32 = arith.constant 4 : i32
    %182 = arith.index_cast %c4_i32 : i32 to index
    %c0_42 = arith.constant 0 : index
    %c0_43 = arith.constant 0 : index
    %183 = vector.load %arg2[%182, %c0_42, %c0_43] : memref<8x8x96xf32, #tpu.memory_space<vmem>>, vector<1x8x96xf32>
    %184 = vector.shape_cast %183 : vector<1x8x96xf32> to vector<8x96xf32>
    %cst_44 = arith.constant dense<0.000000e+00> : vector<8x96xf32>
    %185 = tpu.matmul %181, %1, %cst_44 {dimension_numbers = #tpu.dot_dimension_numbers<[1], [0], [0], [1], [0, 0, 1, 1], [], []>} : vector<8x32xf32>, vector<32x96xf32>, vector<8x96xf32> -> vector<8x96xf32>
    %186 = vector.extract_strided_slice %184 {offsets = [0, 0], sizes = [8, 32], strides = [1, 1]} : vector<8x96xf32> to vector<8x32xf32>
    %187 = vector.extract_strided_slice %185 {offsets = [0, 0], sizes = [8, 32], strides = [1, 1]} : vector<8x96xf32> to vector<8x32xf32>
    %188 = arith.addf %186, %187 : vector<8x32xf32>
    %189 = arith.negf %188 : vector<8x32xf32>
    %190 = math.exp %189 : vector<8x32xf32>
    %cst_45 = arith.constant 1.000000e+00 : f32
    %191 = vector.broadcast %cst_45 : f32 to vector<8x32xf32>
    %192 = arith.addf %191, %190 : vector<8x32xf32>
    %193 = arith.divf %191, %192 : vector<8x32xf32>
    %194 = vector.extract_strided_slice %184 {offsets = [0, 32], sizes = [8, 32], strides = [1, 1]} : vector<8x96xf32> to vector<8x32xf32>
    %195 = vector.extract_strided_slice %185 {offsets = [0, 32], sizes = [8, 32], strides = [1, 1]} : vector<8x96xf32> to vector<8x32xf32>
    %196 = arith.addf %194, %195 : vector<8x32xf32>
    %197 = arith.negf %196 : vector<8x32xf32>
    %198 = math.exp %197 : vector<8x32xf32>
    %cst_46 = arith.constant 1.000000e+00 : f32
    %199 = vector.broadcast %cst_46 : f32 to vector<8x32xf32>
    %200 = arith.addf %199, %198 : vector<8x32xf32>
    %201 = arith.divf %199, %200 : vector<8x32xf32>
    %202 = vector.extract_strided_slice %184 {offsets = [0, 64], sizes = [8, 32], strides = [1, 1]} : vector<8x96xf32> to vector<8x32xf32>
    %203 = vector.extract_strided_slice %185 {offsets = [0, 64], sizes = [8, 32], strides = [1, 1]} : vector<8x96xf32> to vector<8x32xf32>
    %204 = arith.addf %203, %4 : vector<8x32xf32>
    %205 = arith.mulf %193, %204 : vector<8x32xf32>
    %206 = arith.addf %202, %205 : vector<8x32xf32>
    %207 = math.tanh %206 : vector<8x32xf32>
    %cst_47 = arith.constant 1.000000e+00 : f32
    %208 = vector.broadcast %cst_47 : f32 to vector<8x32xf32>
    %209 = arith.subf %208, %201 : vector<8x32xf32>
    %210 = arith.mulf %209, %207 : vector<8x32xf32>
    %211 = arith.mulf %201, %181 : vector<8x32xf32>
    %212 = arith.addf %210, %211 : vector<8x32xf32>
    %213 = vector.broadcast %c4_i32 : i32 to vector<8x1xi32>
    %214 = arith.cmpi slt, %213, %0 : vector<8x1xi32>
    %cst_48 = arith.constant 0.000000e+00 : f32
    %215 = vector.shape_cast %214 : vector<8x1xi1> to vector<8x1xi1>
    %216 = vector.broadcast %215 : vector<8x1xi1> to vector<8x32xi1>
    %217 = vector.broadcast %cst_48 : f32 to vector<8x32xf32>
    %218 = arith.select %216, %212, %217 : vector<8x32xi1>, vector<8x32xf32>
    %219 = arith.index_cast %c4_i32 : i32 to index
    %c0_49 = arith.constant 0 : index
    %c0_50 = arith.constant 0 : index
    %220 = vector.load %arg6[%219, %c0_49, %c0_50] : memref<8x8x32xf32, #tpu.memory_space<vmem>>, vector<1x8x32xf32>
    %221 = vector.shape_cast %220 : vector<1x8x32xf32> to vector<8x32xf32>
    %222 = vector.shape_cast %218 : vector<8x32xf32> to vector<1x8x32xf32>
    tpu.vector_store %arg6[%219, %c0_49, %c0_50], %222 {strides = array<i32>} : memref<8x8x32xf32, #tpu.memory_space<vmem>>, vector<1x8x32xf32>,
    %223 = vector.shape_cast %214 : vector<8x1xi1> to vector<8x1xi1>
    %224 = vector.broadcast %223 : vector<8x1xi1> to vector<8x32xi1>
    %225 = arith.select %224, %212, %181 : vector<8x32xi1>, vector<8x32xf32>
    %c5_i32 = arith.constant 5 : i32
    %226 = arith.index_cast %c5_i32 : i32 to index
    %c0_51 = arith.constant 0 : index
    %c0_52 = arith.constant 0 : index
    %227 = vector.load %arg2[%226, %c0_51, %c0_52] : memref<8x8x96xf32, #tpu.memory_space<vmem>>, vector<1x8x96xf32>
    %228 = vector.shape_cast %227 : vector<1x8x96xf32> to vector<8x96xf32>
    %cst_53 = arith.constant dense<0.000000e+00> : vector<8x96xf32>
    %229 = tpu.matmul %225, %1, %cst_53 {dimension_numbers = #tpu.dot_dimension_numbers<[1], [0], [0], [1], [0, 0, 1, 1], [], []>} : vector<8x32xf32>, vector<32x96xf32>, vector<8x96xf32> -> vector<8x96xf32>
    %230 = vector.extract_strided_slice %228 {offsets = [0, 0], sizes = [8, 32], strides = [1, 1]} : vector<8x96xf32> to vector<8x32xf32>
    %231 = vector.extract_strided_slice %229 {offsets = [0, 0], sizes = [8, 32], strides = [1, 1]} : vector<8x96xf32> to vector<8x32xf32>
    %232 = arith.addf %230, %231 : vector<8x32xf32>
    %233 = arith.negf %232 : vector<8x32xf32>
    %234 = math.exp %233 : vector<8x32xf32>
    %cst_54 = arith.constant 1.000000e+00 : f32
    %235 = vector.broadcast %cst_54 : f32 to vector<8x32xf32>
    %236 = arith.addf %235, %234 : vector<8x32xf32>
    %237 = arith.divf %235, %236 : vector<8x32xf32>
    %238 = vector.extract_strided_slice %228 {offsets = [0, 32], sizes = [8, 32], strides = [1, 1]} : vector<8x96xf32> to vector<8x32xf32>
    %239 = vector.extract_strided_slice %229 {offsets = [0, 32], sizes = [8, 32], strides = [1, 1]} : vector<8x96xf32> to vector<8x32xf32>
    %240 = arith.addf %238, %239 : vector<8x32xf32>
    %241 = arith.negf %240 : vector<8x32xf32>
    %242 = math.exp %241 : vector<8x32xf32>
    %cst_55 = arith.constant 1.000000e+00 : f32
    %243 = vector.broadcast %cst_55 : f32 to vector<8x32xf32>
    %244 = arith.addf %243, %242 : vector<8x32xf32>
    %245 = arith.divf %243, %244 : vector<8x32xf32>
    %246 = vector.extract_strided_slice %228 {offsets = [0, 64], sizes = [8, 32], strides = [1, 1]} : vector<8x96xf32> to vector<8x32xf32>
    %247 = vector.extract_strided_slice %229 {offsets = [0, 64], sizes = [8, 32], strides = [1, 1]} : vector<8x96xf32> to vector<8x32xf32>
    %248 = arith.addf %247, %4 : vector<8x32xf32>
    %249 = arith.mulf %237, %248 : vector<8x32xf32>
    %250 = arith.addf %246, %249 : vector<8x32xf32>
    %251 = math.tanh %250 : vector<8x32xf32>
    %cst_56 = arith.constant 1.000000e+00 : f32
    %252 = vector.broadcast %cst_56 : f32 to vector<8x32xf32>
    %253 = arith.subf %252, %245 : vector<8x32xf32>
    %254 = arith.mulf %253, %251 : vector<8x32xf32>
    %255 = arith.mulf %245, %225 : vector<8x32xf32>
    %256 = arith.addf %254, %255 : vector<8x32xf32>
    %257 = vector.broadcast %c5_i32 : i32 to vector<8x1xi32>
    %258 = arith.cmpi slt, %257, %0 : vector<8x1xi32>
    %cst_57 = arith.constant 0.000000e+00 : f32
    %259 = vector.shape_cast %258 : vector<8x1xi1> to vector<8x1xi1>
    %260 = vector.broadcast %259 : vector<8x1xi1> to vector<8x32xi1>
    %261 = vector.broadcast %cst_57 : f32 to vector<8x32xf32>
    %262 = arith.select %260, %256, %261 : vector<8x32xi1>, vector<8x32xf32>
    %263 = arith.index_cast %c5_i32 : i32 to index
    %c0_58 = arith.constant 0 : index
    %c0_59 = arith.constant 0 : index
    %264 = vector.load %arg6[%263, %c0_58, %c0_59] : memref<8x8x32xf32, #tpu.memory_space<vmem>>, vector<1x8x32xf32>
    %265 = vector.shape_cast %264 : vector<1x8x32xf32> to vector<8x32xf32>
    %266 = vector.shape_cast %262 : vector<8x32xf32> to vector<1x8x32xf32>
    tpu.vector_store %arg6[%263, %c0_58, %c0_59], %266 {strides = array<i32>} : memref<8x8x32xf32, #tpu.memory_space<vmem>>, vector<1x8x32xf32>,
    %267 = vector.shape_cast %258 : vector<8x1xi1> to vector<8x1xi1>
    %268 = vector.broadcast %267 : vector<8x1xi1> to vector<8x32xi1>
    %269 = arith.select %268, %256, %225 : vector<8x32xi1>, vector<8x32xf32>
    %c6_i32 = arith.constant 6 : i32
    %270 = arith.index_cast %c6_i32 : i32 to index
    %c0_60 = arith.constant 0 : index
    %c0_61 = arith.constant 0 : index
    %271 = vector.load %arg2[%270, %c0_60, %c0_61] : memref<8x8x96xf32, #tpu.memory_space<vmem>>, vector<1x8x96xf32>
    %272 = vector.shape_cast %271 : vector<1x8x96xf32> to vector<8x96xf32>
    %cst_62 = arith.constant dense<0.000000e+00> : vector<8x96xf32>
    %273 = tpu.matmul %269, %1, %cst_62 {dimension_numbers = #tpu.dot_dimension_numbers<[1], [0], [0], [1], [0, 0, 1, 1], [], []>} : vector<8x32xf32>, vector<32x96xf32>, vector<8x96xf32> -> vector<8x96xf32>
    %274 = vector.extract_strided_slice %272 {offsets = [0, 0], sizes = [8, 32], strides = [1, 1]} : vector<8x96xf32> to vector<8x32xf32>
    %275 = vector.extract_strided_slice %273 {offsets = [0, 0], sizes = [8, 32], strides = [1, 1]} : vector<8x96xf32> to vector<8x32xf32>
    %276 = arith.addf %274, %275 : vector<8x32xf32>
    %277 = arith.negf %276 : vector<8x32xf32>
    %278 = math.exp %277 : vector<8x32xf32>
    %cst_63 = arith.constant 1.000000e+00 : f32
    %279 = vector.broadcast %cst_63 : f32 to vector<8x32xf32>
    %280 = arith.addf %279, %278 : vector<8x32xf32>
    %281 = arith.divf %279, %280 : vector<8x32xf32>
    %282 = vector.extract_strided_slice %272 {offsets = [0, 32], sizes = [8, 32], strides = [1, 1]} : vector<8x96xf32> to vector<8x32xf32>
    %283 = vector.extract_strided_slice %273 {offsets = [0, 32], sizes = [8, 32], strides = [1, 1]} : vector<8x96xf32> to vector<8x32xf32>
    %284 = arith.addf %282, %283 : vector<8x32xf32>
    %285 = arith.negf %284 : vector<8x32xf32>
    %286 = math.exp %285 : vector<8x32xf32>
    %cst_64 = arith.constant 1.000000e+00 : f32
    %287 = vector.broadcast %cst_64 : f32 to vector<8x32xf32>
    %288 = arith.addf %287, %286 : vector<8x32xf32>
    %289 = arith.divf %287, %288 : vector<8x32xf32>
    %290 = vector.extract_strided_slice %272 {offsets = [0, 64], sizes = [8, 32], strides = [1, 1]} : vector<8x96xf32> to vector<8x32xf32>
    %291 = vector.extract_strided_slice %273 {offsets = [0, 64], sizes = [8, 32], strides = [1, 1]} : vector<8x96xf32> to vector<8x32xf32>
    %292 = arith.addf %291, %4 : vector<8x32xf32>
    %293 = arith.mulf %281, %292 : vector<8x32xf32>
    %294 = arith.addf %290, %293 : vector<8x32xf32>
    %295 = math.tanh %294 : vector<8x32xf32>
    %cst_65 = arith.constant 1.000000e+00 : f32
    %296 = vector.broadcast %cst_65 : f32 to vector<8x32xf32>
    %297 = arith.subf %296, %289 : vector<8x32xf32>
    %298 = arith.mulf %297, %295 : vector<8x32xf32>
    %299 = arith.mulf %289, %269 : vector<8x32xf32>
    %300 = arith.addf %298, %299 : vector<8x32xf32>
    %301 = vector.broadcast %c6_i32 : i32 to vector<8x1xi32>
    %302 = arith.cmpi slt, %301, %0 : vector<8x1xi32>
    %cst_66 = arith.constant 0.000000e+00 : f32
    %303 = vector.shape_cast %302 : vector<8x1xi1> to vector<8x1xi1>
    %304 = vector.broadcast %303 : vector<8x1xi1> to vector<8x32xi1>
    %305 = vector.broadcast %cst_66 : f32 to vector<8x32xf32>
    %306 = arith.select %304, %300, %305 : vector<8x32xi1>, vector<8x32xf32>
    %307 = arith.index_cast %c6_i32 : i32 to index
    %c0_67 = arith.constant 0 : index
    %c0_68 = arith.constant 0 : index
    %308 = vector.load %arg6[%307, %c0_67, %c0_68] : memref<8x8x32xf32, #tpu.memory_space<vmem>>, vector<1x8x32xf32>
    %309 = vector.shape_cast %308 : vector<1x8x32xf32> to vector<8x32xf32>
    %310 = vector.shape_cast %306 : vector<8x32xf32> to vector<1x8x32xf32>
    tpu.vector_store %arg6[%307, %c0_67, %c0_68], %310 {strides = array<i32>} : memref<8x8x32xf32, #tpu.memory_space<vmem>>, vector<1x8x32xf32>,
    %311 = vector.shape_cast %302 : vector<8x1xi1> to vector<8x1xi1>
    %312 = vector.broadcast %311 : vector<8x1xi1> to vector<8x32xi1>
    %313 = arith.select %312, %300, %269 : vector<8x32xi1>, vector<8x32xf32>
    %c7_i32 = arith.constant 7 : i32
    %314 = arith.index_cast %c7_i32 : i32 to index
    %c0_69 = arith.constant 0 : index
    %c0_70 = arith.constant 0 : index
    %315 = vector.load %arg2[%314, %c0_69, %c0_70] : memref<8x8x96xf32, #tpu.memory_space<vmem>>, vector<1x8x96xf32>
    %316 = vector.shape_cast %315 : vector<1x8x96xf32> to vector<8x96xf32>
    %cst_71 = arith.constant dense<0.000000e+00> : vector<8x96xf32>
    %317 = tpu.matmul %313, %1, %cst_71 {dimension_numbers = #tpu.dot_dimension_numbers<[1], [0], [0], [1], [0, 0, 1, 1], [], []>} : vector<8x32xf32>, vector<32x96xf32>, vector<8x96xf32> -> vector<8x96xf32>
    %318 = vector.extract_strided_slice %316 {offsets = [0, 0], sizes = [8, 32], strides = [1, 1]} : vector<8x96xf32> to vector<8x32xf32>
    %319 = vector.extract_strided_slice %317 {offsets = [0, 0], sizes = [8, 32], strides = [1, 1]} : vector<8x96xf32> to vector<8x32xf32>
    %320 = arith.addf %318, %319 : vector<8x32xf32>
    %321 = arith.negf %320 : vector<8x32xf32>
    %322 = math.exp %321 : vector<8x32xf32>
    %cst_72 = arith.constant 1.000000e+00 : f32
    %323 = vector.broadcast %cst_72 : f32 to vector<8x32xf32>
    %324 = arith.addf %323, %322 : vector<8x32xf32>
    %325 = arith.divf %323, %324 : vector<8x32xf32>
    %326 = vector.extract_strided_slice %316 {offsets = [0, 32], sizes = [8, 32], strides = [1, 1]} : vector<8x96xf32> to vector<8x32xf32>
    %327 = vector.extract_strided_slice %317 {offsets = [0, 32], sizes = [8, 32], strides = [1, 1]} : vector<8x96xf32> to vector<8x32xf32>
    %328 = arith.addf %326, %327 : vector<8x32xf32>
    %329 = arith.negf %328 : vector<8x32xf32>
    %330 = math.exp %329 : vector<8x32xf32>
    %cst_73 = arith.constant 1.000000e+00 : f32
    %331 = vector.broadcast %cst_73 : f32 to vector<8x32xf32>
    %332 = arith.addf %331, %330 : vector<8x32xf32>
    %333 = arith.divf %331, %332 : vector<8x32xf32>
    %334 = vector.extract_strided_slice %316 {offsets = [0, 64], sizes = [8, 32], strides = [1, 1]} : vector<8x96xf32> to vector<8x32xf32>
    %335 = vector.extract_strided_slice %317 {offsets = [0, 64], sizes = [8, 32], strides = [1, 1]} : vector<8x96xf32> to vector<8x32xf32>
    %336 = arith.addf %335, %4 : vector<8x32xf32>
    %337 = arith.mulf %325, %336 : vector<8x32xf32>
    %338 = arith.addf %334, %337 : vector<8x32xf32>
    %339 = math.tanh %338 : vector<8x32xf32>
    %cst_74 = arith.constant 1.000000e+00 : f32
    %340 = vector.broadcast %cst_74 : f32 to vector<8x32xf32>
    %341 = arith.subf %340, %333 : vector<8x32xf32>
    %342 = arith.mulf %341, %339 : vector<8x32xf32>
    %343 = arith.mulf %333, %313 : vector<8x32xf32>
    %344 = arith.addf %342, %343 : vector<8x32xf32>
    %345 = vector.broadcast %c7_i32 : i32 to vector<8x1xi32>
    %346 = arith.cmpi slt, %345, %0 : vector<8x1xi32>
    %cst_75 = arith.constant 0.000000e+00 : f32
    %347 = vector.shape_cast %346 : vector<8x1xi1> to vector<8x1xi1>
    %348 = vector.broadcast %347 : vector<8x1xi1> to vector<8x32xi1>
    %349 = vector.broadcast %cst_75 : f32 to vector<8x32xf32>
    %350 = arith.select %348, %344, %349 : vector<8x32xi1>, vector<8x32xf32>
    %351 = arith.index_cast %c7_i32 : i32 to index
    %c0_76 = arith.constant 0 : index
    %c0_77 = arith.constant 0 : index
    %352 = vector.load %arg6[%351, %c0_76, %c0_77] : memref<8x8x32xf32, #tpu.memory_space<vmem>>, vector<1x8x32xf32>
    %353 = vector.shape_cast %352 : vector<1x8x32xf32> to vector<8x32xf32>
    %354 = vector.shape_cast %350 : vector<8x32xf32> to vector<1x8x32xf32>
    tpu.vector_store %arg6[%351, %c0_76, %c0_77], %354 {strides = array<i32>} : memref<8x8x32xf32, #tpu.memory_space<vmem>>, vector<1x8x32xf32>,
    %355 = vector.shape_cast %346 : vector<8x1xi1> to vector<8x1xi1>
    %356 = vector.broadcast %355 : vector<8x1xi1> to vector<8x32xi1>
    %357 = arith.select %356, %344, %313 : vector<8x32xi1>, vector<8x32xf32>
    %c8_i32 = arith.constant 8 : i32
    %c0_78 = arith.constant 0 : index
    %c0_79 = arith.constant 0 : index
    %358 = vector.load %arg7[%c0_78, %c0_79] : memref<8x32xf32, #tpu.memory_space<vmem>>, vector<8x32xf32>
    tpu.vector_store %arg7[%c0_78, %c0_79], %357 {strides = array<i32>} : memref<8x32xf32, #tpu.memory_space<vmem>>, vector<8x32xf32>,
    return
  }
  func.func @transform_0(%arg0: i32) -> (i32, i32) {
    %c0_i32 = arith.constant 0 : i32
    %c0_i32_0 = arith.constant 0 : i32
    return %arg0, %c0_i32 : i32, i32
  }
  func.func @transform_1(%arg0: i32) -> (i32, i32, i32) {
    %c0_i32 = arith.constant 0 : i32
    %c0_i32_0 = arith.constant 0 : i32
    %c0_i32_1 = arith.constant 0 : i32
    return %c0_i32, %arg0, %c0_i32_0 : i32, i32, i32
  }
  func.func @transform_2(%arg0: i32) -> (i32, i32) {
    %c0_i32 = arith.constant 0 : i32
    %c0_i32_0 = arith.constant 0 : i32
    return %arg0, %c0_i32 : i32, i32
  }
  func.func @transform_3(%arg0: i32) -> (i32, i32) {
    %c0_i32 = arith.constant 0 : i32
    %c0_i32_0 = arith.constant 0 : i32
    %c0_i32_1 = arith.constant 0 : i32
    return %c0_i32, %c0_i32_0 : i32, i32
  }
  func.func @transform_4(%arg0: i32) -> (i32, i32) {
    %c0_i32 = arith.constant 0 : i32
    %c0_i32_0 = arith.constant 0 : i32
    %c0_i32_1 = arith.constant 0 : i32
    return %c0_i32, %c0_i32_0 : i32, i32
  }
  func.func @transform_5(%arg0: i32) -> (i32, i32, i32) {
    %c0_i32 = arith.constant 0 : i32
    %c0_i32_0 = arith.constant 0 : i32
    %c0_i32_1 = arith.constant 0 : i32
    return %c0_i32, %arg0, %c0_i32_0 : i32, i32, i32
  }
  func.func @transform_6(%arg0: i32) -> (i32, i32) {
    %c0_i32 = arith.constant 0 : i32
    %c0_i32_0 = arith.constant 0 : i32
    return %arg0, %c0_i32 : i32, i32
  }
}

</mosaic_0001>

<llo_original>
// kernel: tpu_custom_call.1
$region0: #{tpu_custom_call.1}
  #allocation0 [shape = 'u32[]', space=smem, size = 0x4, offset = 0x4, fixed_abs, tag = 'smem constant byte address 0x4 - core index']
  #allocation1 [shape = 'u32[72,128]{1,0:T(1,128)}', space=vmem, size = 0x9000, scoped, tag = 'internal scratch']
  %s0 = inlined_call_operand.vmem [shape: s32[8,1], index: 0, kind: input, shape index: {}]
  %s1 = inlined_call_operand.hbm [shape: f32[8,8,96], index: 1, kind: input, shape index: {}]
  %s2 = inlined_call_operand.vmem [shape: f32[8,32], index: 2, kind: input, shape index: {}]
  %s3 = inlined_call_operand.hbm [shape: f32[32,96], index: 3, kind: input, shape index: {}]
  %s4 = inlined_call_operand.vmem [shape: f32[1,32], index: 4, kind: input, shape index: {}]
  %s5 = inlined_call_operand.hbm [shape: f32[8,8,32], index: 5, kind: output, shape index: {0}]
  %s6 = inlined_call_operand.hbm [shape: f32[8,32], index: 6, kind: output, shape index: {1}]
  %7 = xla_tuple %s5, %s6
  %s8 = sld [smem:[#allocation0]]
  $region46: #{tpu_custom_call.1} parent=0
    _
  %s10 = ssub.s32 1, %s8
  %s11 = scalar_select 0, %s10, %s8
  $region1: #{tpu_custom_call.1} parent=0
    #allocation2 [shape = 'u8[32768]{0}', space=vmem, size = 0x8000, scoped, tag = 'input window, operand 1, single buffered']
    #allocation3 [shape = 's32[1]{0}', space=sflag, size = 0x4, scoped, tag = 'scoped memory for tpu_custom_call.1']
    #allocation4 [shape = 's32[1]{0}', space=sflag, size = 0x4, scoped, tag = 'scoped memory for tpu_custom_call.1']
    #allocation5 [shape = 'u8[16384]{0}', space=vmem, size = 0x4000, scoped, tag = 'input window, operand 3, single buffered']
    #allocation6 [shape = 's32[1]{0}', space=sflag, size = 0x4, scoped, tag = 'scoped memory for tpu_custom_call.1']
    #allocation7 [shape = 'u8[32768]{0}', space=vmem, size = 0x8000, scoped, tag = 'output window, operand 0, single buffered']
    #allocation8 [shape = 'u8[4096]{0}', space=vmem, size = 0x1000, scoped, tag = 'output window, operand 1, single buffered']
    #allocation9 [shape = 's32[1]{0}', space=sflag, size = 0x4, scoped, tag = 'scoped memory for tpu_custom_call.1']
    %12 = vsyncpa [#allocation3], 0
    %13 = vsyncpa [#allocation6], 0
    %14 = vsyncpa [#allocation4], 0
    %15 = vsyncpa [#allocation9], 0
    // Predicated region
    $region2: #{tpu_custom_call.1} parent=1 // pred_check
      _
    $region3: #{tpu_custom_call.1} parent=1 // pred_check_branch
      %17 = sbr.rel (0) target = $region5
    $region4: #{tpu_custom_call.1} parent=1 // pred_region
      _
    $region5: #{tpu_custom_call.1} parent=1 // pred_fallthru
      _
    // Predicated region
    $region6: #{tpu_custom_call.1} parent=1 // pred_check
      _
    $region7: #{tpu_custom_call.1} parent=1 // pred_check_branch
      %19 = sbr.rel (0) target = $region9
    $region8: #{tpu_custom_call.1} parent=1 // pred_region
      %21 = vsyncadd [#allocation3], 0
      %s22 = sshll.u32 %s1, 4
      %s23 = int_to_ptr.hbm [resolvable:$true] %s22
      %s24 = sshll.u32 [#allocation2], 4
      %s25 = int_to_ptr.vmem [resolvable:$true] %s24
      %30 = dma.hbm_to_vmem [thread:$0]  %s23, 1024, %s25, [#allocation3], 128, 128, 8
    $region9: #{tpu_custom_call.1} parent=1 // pred_fallthru
      _
    // Predicated region
    $region10: #{tpu_custom_call.1} parent=1 // pred_check
      _
    $region11: #{tpu_custom_call.1} parent=1 // pred_check_branch
      %32 = sbr.rel (0) target = $region13
    $region12: #{tpu_custom_call.1} parent=1 // pred_region
      _
    $region13: #{tpu_custom_call.1} parent=1 // pred_fallthru
      _
    // Predicated region
    $region14: #{tpu_custom_call.1} parent=1 // pred_check
      _
    $region15: #{tpu_custom_call.1} parent=1 // pred_check_branch
      %34 = sbr.rel (0) target = $region17
    $region16: #{tpu_custom_call.1} parent=1 // pred_region
      %36 = vsyncadd [#allocation6], 0
      %s37 = sshll.u32 %s3, 4
      %s38 = int_to_ptr.hbm [resolvable:$true] %s37
      %s39 = sshll.u32 [#allocation5], 4
      %s40 = int_to_ptr.vmem [resolvable:$true] %s39
      %45 = dma.hbm_to_vmem [thread:$0]  %s38, 512, %s40, [#allocation6], 128, 128, 8
    $region17: #{tpu_custom_call.1} parent=1 // pred_fallthru
      _
    // Predicated region
    $region18: #{tpu_custom_call.1} parent=1 // pred_check
      _
    $region19: #{tpu_custom_call.1} parent=1 // pred_check_branch
      %47 = sbr.rel (0) target = $region21
    $region20: #{tpu_custom_call.1} parent=1 // pred_region
      _
    $region21: #{tpu_custom_call.1} parent=1 // pred_fallthru
      _
    // Predicated region
    $region22: #{tpu_custom_call.1} parent=1 // pred_check
      _
    $region23: #{tpu_custom_call.1} parent=1 // pred_check_branch
      %49 = sbr.rel (0) target = $region25
    $region24: #{tpu_custom_call.1} parent=1 // pred_region
      %51 = dma.done [#allocation3], 1024
    $region25: #{tpu_custom_call.1} parent=1 // pred_fallthru
      _
    // Predicated region
    $region26: #{tpu_custom_call.1} parent=1 // pred_check
      _
    $region27: #{tpu_custom_call.1} parent=1 // pred_check_branch
      %53 = sbr.rel (0) target = $region29
    $region28: #{tpu_custom_call.1} parent=1 // pred_region
      %55 = dma.done [#allocation6], 512
    $region29: #{tpu_custom_call.1} parent=1 // pred_fallthru
      _
    %v56 = vld [vmem:[%s0] sm:$0xff]
    %v57 = vld [vmem:[#allocation5] sm:$0xff]
    %v58 = vld [vmem:[#allocation5 + $0x8] sm:$0xff]
    %v59 = vld [vmem:[#allocation5 + $0x10] sm:$0xff]
    %v60 = vld [vmem:[#allocation5 + $0x18] sm:$0xff]
    %v61 = vld [vmem:[%s4] sm:$0x1]
    %v63 = vperm.slane %v61, 0
    %v64 = vld [vmem:[%s2] sm:$0xff]
    %v65 = vld [vmem:[#allocation2] sm:$0xff]
    %vm66 = vcmask 261120
    %v68 = vsel %vm66, %v64, 0
    %70 = vmatpush.msra.mxu0 0.0
    %71 = vmatpush.msra.mxu0 0.0
    %72 = vmatpush.msra.mxu0 0.0
    %73 = vmatpush.msra.mxu0 0.0
    %74 = vmatpush.msra.mxu0 0.0
    %75 = vmatpush.msra.mxu0 0.0
    %76 = vmatpush.msra.mxu0 0.0
    %77 = vmatpush.msra.mxu0 0.0
    %78 = vmatpush.msra.mxu0 0.0
    %79 = vmatpush.msra.mxu0 0.0
    %80 = vmatpush.msra.mxu0 0.0
    %81 = vmatpush.msra.mxu0 0.0
    %82 = vmatpush.msra.mxu0 %v60
    %83 = vmatpush.msra.mxu0 %v59
    %84 = vmatpush.msra.mxu0 %v58
    %85 = vmatpush.msra.mxu0 %v57
    %86 = vmatmul.f32.gmra.mxu0 %v68
    %v87 = vpop.f32.mrf.mxu0
    %v88 = vadd.f32 0.0, %v87
    %89 = vdwg.mxu0
    %v90 = vadd.f32 %v65, %v88
    %v91 = vxor.u32 %v90, 2147483648
    %v92 = vmul.f32 %v91, 1.442695
    %v93 = vpow.pop %v92
    %v94 = vadd.f32 %v93, 1.0
    %v95 = vrcp.pop %v94
    %v96 = vmul.f32 %v94, %v95
    %v97 = vsub.f32 1.0, %v96
    %v98 = vmul.f32 %v95, %v97
    %v99 = vadd.f32 %v95, %v98
    %vm100 = vweird.f32 %v94
    %vm101 = vweird.f32 %v95
    %vm102 = vmor %vm100, %vm101
    %v103 = vsel %vm102, %v95, %v99
    %v104 = vand.u32 2147483647, %v94
    %vm105 = vcmp.eq.f32.partialorder %v104, 8.507059e+37
    %v106 = vand.u32 %v94, 2147483648
    %v107 = vor.u32 1.1754944e-38, %v106
    %v108 = vsel %vm105, %v107, %v103
    %v109 = vmul.f32 1.0, %v108
    %110 = vrot.lane.b32.xlu0 %v63, 64
    %v111 = vpop.permute.xlu0 %110
    %v113 = vadd.f32 %v88, %v111
    %115 = vrot.lane.b32.xlu0 %v113, 64
    %v116 = vpop.permute.xlu0 %115
    %v118 = vmul.f32 %v109, %v116
    %120 = vrot.lane.b32.xlu0 %v118, 64
    %v121 = vpop.permute.xlu0 %120
    %v123 = vadd.f32 %v65, %v121
    %v124 = vtanh.pop %v123
    %v125 = vsub.f32 1.0, %v109
    %127 = vrot.lane.b32.xlu0 %v124, 96
    %v128 = vpop.permute.xlu0 %127
    %v130 = vmul.f32 %v125, %v128
    %131 = vrot.lane.b32.xlu0 %v64, 32
    %v132 = vpop.permute.xlu0 %131
    %v134 = vmul.f32 %v109, %v132
    %v135 = vadd.f32 %v130, %v134
    %vm136 = vcmp.gt.s32.totalorder %v56, 0
    %v137 = vsel %vm136, 1, 0
    %138 = vset.pattern.permute.xlu0 0
    %139 = vperm.xlu0 %138, %v137
    %v140 = vpop.permute.xlu0 %139
    %vm141 = vcmp.eq.s32.totalorder %v140, 1
    %v142 = vsel %vm141, %v135, 0.0
    %144 = vrot.lane.b32.xlu0 %v142, 96
    %v145 = vpop.permute.xlu0 %144
    %147 = vst.msk [vmem:[#allocation7] sm:$0xff] %vm66, %v145
    %v148 = vsel %vm141, %v135, %v132
    %s149 = scalar_lea.vmem [#allocation2], 8
    %v150 = vld [vmem:[%s149] sm:$0xff]
    %152 = vrot.lane.b32.xlu0 %v148, 96
    %v153 = vpop.permute.xlu0 %152
    %v154 = vsel %vm66, %v153, 0
    %156 = vmatpush.msra.mxu0 0.0
    %157 = vmatpush.msra.mxu0 0.0
    %158 = vmatpush.msra.mxu0 0.0
    %159 = vmatpush.msra.mxu0 0.0
    %160 = vmatpush.msra.mxu0 0.0
    %161 = vmatpush.msra.mxu0 0.0
    %162 = vmatpush.msra.mxu0 0.0
    %163 = vmatpush.msra.mxu0 0.0
    %164 = vmatpush.msra.mxu0 0.0
    %165 = vmatpush.msra.mxu0 0.0
    %166 = vmatpush.msra.mxu0 0.0
    %167 = vmatpush.msra.mxu0 0.0
    %168 = vmatpush.msra.mxu0 %v60
    %169 = vmatpush.msra.mxu0 %v59
    %170 = vmatpush.msra.mxu0 %v58
    %171 = vmatpush.msra.mxu0 %v57
    %172 = vmatmul.f32.gmra.mxu0 %v154
    %v173 = vpop.f32.mrf.mxu0
    %v174 = vadd.f32 0.0, %v173
    %175 = vdwg.mxu0
    %v176 = vadd.f32 %v150, %v174
    %v177 = vxor.u32 %v176, 2147483648
    %v178 = vmul.f32 %v177, 1.442695
    %v179 = vpow.pop %v178
    %v180 = vadd.f32 %v179, 1.0
    %v181 = vrcp.pop %v180
    %v182 = vmul.f32 %v180, %v181
    %v183 = vsub.f32 1.0, %v182
    %v184 = vmul.f32 %v181, %v183
    %v185 = vadd.f32 %v181, %v184
    %vm186 = vweird.f32 %v180
    %vm187 = vweird.f32 %v181
    %vm188 = vmor %vm186, %vm187
    %v189 = vsel %vm188, %v181, %v185
    %v190 = vand.u32 2147483647, %v180
    %vm191 = vcmp.eq.f32.partialorder %v190, 8.507059e+37
    %v192 = vand.u32 %v180, 2147483648
    %v193 = vor.u32 1.1754944e-38, %v192
    %v194 = vsel %vm191, %v193, %v189
    %v195 = vmul.f32 1.0, %v194
    %v196 = vadd.f32 %v174, %v111
    %198 = vrot.lane.b32.xlu0 %v196, 64
    %v199 = vpop.permute.xlu0 %198
    %v201 = vmul.f32 %v195, %v199
    %203 = vrot.lane.b32.xlu0 %v201, 64
    %v204 = vpop.permute.xlu0 %203
    %v206 = vadd.f32 %v150, %v204
    %v207 = vtanh.pop %v206
    %v208 = vsub.f32 1.0, %v195
    %210 = vrot.lane.b32.xlu0 %v207, 96
    %v211 = vpop.permute.xlu0 %210
    %v213 = vmul.f32 %v208, %v211
    %v214 = vmul.f32 %v195, %v148
    %v215 = vadd.f32 %v213, %v214
    %vm216 = vcmp.gt.s32.totalorder %v56, 1
    %v217 = vsel %vm216, 1, 0
    %218 = vset.pattern.permute.xlu0 0
    %219 = vperm.xlu0 %218, %v217
    %v220 = vpop.permute.xlu0 %219
    %vm221 = vcmp.eq.s32.totalorder %v220, 1
    %v222 = vsel %vm221, %v215, 0.0
    %224 = vrot.lane.b32.xlu0 %v222, 96
    %v225 = vpop.permute.xlu0 %224
    %s227 = scalar_lea.vmem [#allocation7], 8
    %228 = vst.msk [vmem:[%s227] sm:$0xff] %vm66, %v225
    %v229 = vsel %vm221, %v215, %v148
    %s230 = scalar_lea.vmem [#allocation2], 16
    %v231 = vld [vmem:[%s230] sm:$0xff]
    %233 = vrot.lane.b32.xlu0 %v229, 96
    %v234 = vpop.permute.xlu0 %233
    %v235 = vsel %vm66, %v234, 0
    %237 = vmatpush.msra.mxu0 0.0
    %238 = vmatpush.msra.mxu0 0.0
    %239 = vmatpush.msra.mxu0 0.0
    %240 = vmatpush.msra.mxu0 0.0
    %241 = vmatpush.msra.mxu0 0.0
    %242 = vmatpush.msra.mxu0 0.0
    %243 = vmatpush.msra.mxu0 0.0
    %244 = vmatpush.msra.mxu0 0.0
    %245 = vmatpush.msra.mxu0 0.0
    %246 = vmatpush.msra.mxu0 0.0
    %247 = vmatpush.msra.mxu0 0.0
    %248 = vmatpush.msra.mxu0 0.0
    %249 = vmatpush.msra.mxu0 %v60
    %250 = vmatpush.msra.mxu0 %v59
    %251 = vmatpush.msra.mxu0 %v58
    %252 = vmatpush.msra.mxu0 %v57
    %253 = vmatmul.f32.gmra.mxu0 %v235
    %v254 = vpop.f32.mrf.mxu0
    %v255 = vadd.f32 0.0, %v254
    %256 = vdwg.mxu0
    %v257 = vadd.f32 %v231, %v255
    %v258 = vxor.u32 %v257, 2147483648
    %v259 = vmul.f32 %v258, 1.442695
    %v260 = vpow.pop %v259
    %v261 = vadd.f32 %v260, 1.0
    %v262 = vrcp.pop %v261
    %v263 = vmul.f32 %v261, %v262
    %v264 = vsub.f32 1.0, %v263
    %v265 = vmul.f32 %v262, %v264
    %v266 = vadd.f32 %v262, %v265
    %vm267 = vweird.f32 %v261
    %vm268 = vweird.f32 %v262
    %vm269 = vmor %vm267, %vm268
    %v270 = vsel %vm269, %v262, %v266
    %v271 = vand.u32 2147483647, %v261
    %vm272 = vcmp.eq.f32.partialorder %v271, 8.507059e+37
    %v273 = vand.u32 %v261, 2147483648
    %v274 = vor.u32 1.1754944e-38, %v273
    %v275 = vsel %vm272, %v274, %v270
    %v276 = vmul.f32 1.0, %v275
    %v277 = vadd.f32 %v255, %v111
    %279 = vrot.lane.b32.xlu0 %v277, 64
    %v280 = vpop.permute.xlu0 %279
    %v282 = vmul.f32 %v276, %v280
    %284 = vrot.lane.b32.xlu0 %v282, 64
    %v285 = vpop.permute.xlu0 %284
    %v287 = vadd.f32 %v231, %v285
    %v288 = vtanh.pop %v287
    %v289 = vsub.f32 1.0, %v276
    %291 = vrot.lane.b32.xlu0 %v288, 96
    %v292 = vpop.permute.xlu0 %291
    %v294 = vmul.f32 %v289, %v292
    %v295 = vmul.f32 %v276, %v229
    %v296 = vadd.f32 %v294, %v295
    %vm297 = vcmp.gt.s32.totalorder %v56, 2
    %v298 = vsel %vm297, 1, 0
    %299 = vset.pattern.permute.xlu0 0
    %300 = vperm.xlu0 %299, %v298
    %v301 = vpop.permute.xlu0 %300
    %vm302 = vcmp.eq.s32.totalorder %v301, 1
    %v303 = vsel %vm302, %v296, 0.0
    %305 = vrot.lane.b32.xlu0 %v303, 96
    %v306 = vpop.permute.xlu0 %305
    %s308 = scalar_lea.vmem [#allocation7], 16
    %309 = vst.msk [vmem:[%s308] sm:$0xff] %vm66, %v306
    %v310 = vsel %vm302, %v296, %v229
    %s311 = scalar_lea.vmem [#allocation2], 24
    %v312 = vld [vmem:[%s311] sm:$0xff]
    %314 = vrot.lane.b32.xlu0 %v310, 96
    %v315 = vpop.permute.xlu0 %314
    %v316 = vsel %vm66, %v315, 0
    %318 = vmatpush.msra.mxu0 0.0
    %319 = vmatpush.msra.mxu0 0.0
    %320 = vmatpush.msra.mxu0 0.0
    %321 = vmatpush.msra.mxu0 0.0
    %322 = vmatpush.msra.mxu0 0.0
    %323 = vmatpush.msra.mxu0 0.0
    %324 = vmatpush.msra.mxu0 0.0
    %325 = vmatpush.msra.mxu0 0.0
    %326 = vmatpush.msra.mxu0 0.0
    %327 = vmatpush.msra.mxu0 0.0
    %328 = vmatpush.msra.mxu0 0.0
    %329 = vmatpush.msra.mxu0 0.0
    %330 = vmatpush.msra.mxu0 %v60
    %331 = vmatpush.msra.mxu0 %v59
    %332 = vmatpush.msra.mxu0 %v58
    %333 = vmatpush.msra.mxu0 %v57
    %334 = vmatmul.f32.gmra.mxu0 %v316
    %v335 = vpop.f32.mrf.mxu0
    %v336 = vadd.f32 0.0, %v335
    %337 = vdwg.mxu0
    %v338 = vadd.f32 %v312, %v336
    %v339 = vxor.u32 %v338, 2147483648
    %v340 = vmul.f32 %v339, 1.442695
    %v341 = vpow.pop %v340
    %v342 = vadd.f32 %v341, 1.0
    %v343 = vrcp.pop %v342
    %v344 = vmul.f32 %v342, %v343
    %v345 = vsub.f32 1.0, %v344
    %v346 = vmul.f32 %v343, %v345
    %v347 = vadd.f32 %v343, %v346
    %vm348 = vweird.f32 %v342
    %vm349 = vweird.f32 %v343
    %vm350 = vmor %vm348, %vm349
    %v351 = vsel %vm350, %v343, %v347
    %v352 = vand.u32 2147483647, %v342
    %vm353 = vcmp.eq.f32.partialorder %v352, 8.507059e+37
    %v354 = vand.u32 %v342, 2147483648
    %v355 = vor.u32 1.1754944e-38, %v354
    %v356 = vsel %vm353, %v355, %v351
    %v357 = vmul.f32 1.0, %v356
    %v358 = vadd.f32 %v336, %v111
    %360 = vrot.lane.b32.xlu0 %v358, 64
    %v361 = vpop.permute.xlu0 %360
    %v363 = vmul.f32 %v357, %v361
    %365 = vrot.lane.b32.xlu0 %v363, 64
    %v366 = vpop.permute.xlu0 %365
    %v368 = vadd.f32 %v312, %v366
    %v369 = vtanh.pop %v368
    %v370 = vsub.f32 1.0, %v357
    %372 = vrot.lane.b32.xlu0 %v369, 96
    %v373 = vpop.permute.xlu0 %372
    %v375 = vmul.f32 %v370, %v373
    %v376 = vmul.f32 %v357, %v310
    %v377 = vadd.f32 %v375, %v376
    %vm378 = vcmp.gt.s32.totalorder %v56, 3
    %v379 = vsel %vm378, 1, 0
    %380 = vset.pattern.permute.xlu0 0
    %381 = vperm.xlu0 %380, %v379
    %v382 = vpop.permute.xlu0 %381
    %vm383 = vcmp.eq.s32.totalorder %v382, 1
    %v384 = vsel %vm383, %v377, 0.0
    %386 = vrot.lane.b32.xlu0 %v384, 96
    %v387 = vpop.permute.xlu0 %386
    %s389 = scalar_lea.vmem [#allocation7], 24
    %390 = vst.msk [vmem:[%s389] sm:$0xff] %vm66, %v387
    %v391 = vsel %vm383, %v377, %v310
    %s392 = scalar_lea.vmem [#allocation2], 32
    %v393 = vld [vmem:[%s392] sm:$0xff]
    %395 = vrot.lane.b32.xlu0 %v391, 96
    %v396 = vpop.permute.xlu0 %395
    %v397 = vsel %vm66, %v396, 0
    %399 = vmatpush.msra.mxu0 0.0
    %400 = vmatpush.msra.mxu0 0.0
    %401 = vmatpush.msra.mxu0 0.0
    %402 = vmatpush.msra.mxu0 0.0
    %403 = vmatpush.msra.mxu0 0.0
    %404 = vmatpush.msra.mxu0 0.0
    %405 = vmatpush.msra.mxu0 0.0
    %406 = vmatpush.msra.mxu0 0.0
    %407 = vmatpush.msra.mxu0 0.0
    %408 = vmatpush.msra.mxu0 0.0
    %409 = vmatpush.msra.mxu0 0.0
    %410 = vmatpush.msra.mxu0 0.0
    %411 = vmatpush.msra.mxu0 %v60
    %412 = vmatpush.msra.mxu0 %v59
    %413 = vmatpush.msra.mxu0 %v58
    %414 = vmatpush.msra.mxu0 %v57
    %415 = vmatmul.f32.gmra.mxu0 %v397
    %v416 = vpop.f32.mrf.mxu0
    %v417 = vadd.f32 0.0, %v416
    %418 = vdwg.mxu0
    %v419 = vadd.f32 %v393, %v417
    %v420 = vxor.u32 %v419, 2147483648
    %v421 = vmul.f32 %v420, 1.442695
    %v422 = vpow.pop %v421
    %v423 = vadd.f32 %v422, 1.0
    %v424 = vrcp.pop %v423
    %v425 = vmul.f32 %v423, %v424
    %v426 = vsub.f32 1.0, %v425
    %v427 = vmul.f32 %v424, %v426
    %v428 = vadd.f32 %v424, %v427
    %vm429 = vweird.f32 %v423
    %vm430 = vweird.f32 %v424
    %vm431 = vmor %vm429, %vm430
    %v432 = vsel %vm431, %v424, %v428
    %v433 = vand.u32 2147483647, %v423
    %vm434 = vcmp.eq.f32.partialorder %v433, 8.507059e+37
    %v435 = vand.u32 %v423, 2147483648
    %v436 = vor.u32 1.1754944e-38, %v435
    %v437 = vsel %vm434, %v436, %v432
    %v438 = vmul.f32 1.0, %v437
    %v439 = vadd.f32 %v417, %v111
    %441 = vrot.lane.b32.xlu0 %v439, 64
    %v442 = vpop.permute.xlu0 %441
    %v444 = vmul.f32 %v438, %v442
    %446 = vrot.lane.b32.xlu0 %v444, 64
    %v447 = vpop.permute.xlu0 %446
    %v449 = vadd.f32 %v393, %v447
    %v450 = vtanh.pop %v449
    %v451 = vsub.f32 1.0, %v438
    %453 = vrot.lane.b32.xlu0 %v450, 96
    %v454 = vpop.permute.xlu0 %453
    %v456 = vmul.f32 %v451, %v454
    %v457 = vmul.f32 %v438, %v391
    %v458 = vadd.f32 %v456, %v457
    %vm459 = vcmp.gt.s32.totalorder %v56, 4
    %v460 = vsel %vm459, 1, 0
    %461 = vset.pattern.permute.xlu0 0
    %462 = vperm.xlu0 %461, %v460
    %v463 = vpop.permute.xlu0 %462
    %vm464 = vcmp.eq.s32.totalorder %v463, 1
    %v465 = vsel %vm464, %v458, 0.0
    %467 = vrot.lane.b32.xlu0 %v465, 96
    %v468 = vpop.permute.xlu0 %467
    %s470 = scalar_lea.vmem [#allocation7], 32
    %471 = vst.msk [vmem:[%s470] sm:$0xff] %vm66, %v468
    %v472 = vsel %vm464, %v458, %v391
    %s473 = scalar_lea.vmem [#allocation2], 40
    %v474 = vld [vmem:[%s473] sm:$0xff]
    %476 = vrot.lane.b32.xlu0 %v472, 96
    %v477 = vpop.permute.xlu0 %476
    %v478 = vsel %vm66, %v477, 0
    %480 = vmatpush.msra.mxu0 0.0
    %481 = vmatpush.msra.mxu0 0.0
    %482 = vmatpush.msra.mxu0 0.0
    %483 = vmatpush.msra.mxu0 0.0
    %484 = vmatpush.msra.mxu0 0.0
    %485 = vmatpush.msra.mxu0 0.0
    %486 = vmatpush.msra.mxu0 0.0
    %487 = vmatpush.msra.mxu0 0.0
    %488 = vmatpush.msra.mxu0 0.0
    %489 = vmatpush.msra.mxu0 0.0
    %490 = vmatpush.msra.mxu0 0.0
    %491 = vmatpush.msra.mxu0 0.0
    %492 = vmatpush.msra.mxu0 %v60
    %493 = vmatpush.msra.mxu0 %v59
    %494 = vmatpush.msra.mxu0 %v58
    %495 = vmatpush.msra.mxu0 %v57
    %496 = vmatmul.f32.gmra.mxu0 %v478
    %v497 = vpop.f32.mrf.mxu0
    %v498 = vadd.f32 0.0, %v497
    %499 = vdwg.mxu0
    %v500 = vadd.f32 %v474, %v498
    %v501 = vxor.u32 %v500, 2147483648
    %v502 = vmul.f32 %v501, 1.442695
    %v503 = vpow.pop %v502
    %v504 = vadd.f32 %v503, 1.0
    %v505 = vrcp.pop %v504
    %v506 = vmul.f32 %v504, %v505
    %v507 = vsub.f32 1.0, %v506
    %v508 = vmul.f32 %v505, %v507
    %v509 = vadd.f32 %v505, %v508
    %vm510 = vweird.f32 %v504
    %vm511 = vweird.f32 %v505
    %vm512 = vmor %vm510, %vm511
    %v513 = vsel %vm512, %v505, %v509
    %v514 = vand.u32 2147483647, %v504
    %vm515 = vcmp.eq.f32.partialorder %v514, 8.507059e+37
    %v516 = vand.u32 %v504, 2147483648
    %v517 = vor.u32 1.1754944e-38, %v516
    %v518 = vsel %vm515, %v517, %v513
    %v519 = vmul.f32 1.0, %v518
    %v520 = vadd.f32 %v498, %v111
    %522 = vrot.lane.b32.xlu0 %v520, 64
    %v523 = vpop.permute.xlu0 %522
    %v525 = vmul.f32 %v519, %v523
    %527 = vrot.lane.b32.xlu0 %v525, 64
    %v528 = vpop.permute.xlu0 %527
    %v530 = vadd.f32 %v474, %v528
    %v531 = vtanh.pop %v530
    %v532 = vsub.f32 1.0, %v519
    %534 = vrot.lane.b32.xlu0 %v531, 96
    %v535 = vpop.permute.xlu0 %534
    %v537 = vmul.f32 %v532, %v535
    %v538 = vmul.f32 %v519, %v472
    %v539 = vadd.f32 %v537, %v538
    %vm540 = vcmp.gt.s32.totalorder %v56, 5
    %v541 = vsel %vm540, 1, 0
    %542 = vset.pattern.permute.xlu0 0
    %543 = vperm.xlu0 %542, %v541
    %v544 = vpop.permute.xlu0 %543
    %vm545 = vcmp.eq.s32.totalorder %v544, 1
    %v546 = vsel %vm545, %v539, 0.0
    %548 = vrot.lane.b32.xlu0 %v546, 96
    %v549 = vpop.permute.xlu0 %548
    %s551 = scalar_lea.vmem [#allocation7], 40
    %552 = vst.msk [vmem:[%s551] sm:$0xff] %vm66, %v549
    %v553 = vsel %vm545, %v539, %v472
    %s554 = scalar_lea.vmem [#allocation2], 48
    %v555 = vld [vmem:[%s554] sm:$0xff]
    %557 = vrot.lane.b32.xlu0 %v553, 96
    %v558 = vpop.permute.xlu0 %557
    %v559 = vsel %vm66, %v558, 0
    %561 = vmatpush.msra.mxu0 0.0
    %562 = vmatpush.msra.mxu0 0.0
    %563 = vmatpush.msra.mxu0 0.0
    %564 = vmatpush.msra.mxu0 0.0
    %565 = vmatpush.msra.mxu0 0.0
    %566 = vmatpush.msra.mxu0 0.0
    %567 = vmatpush.msra.mxu0 0.0
    %568 = vmatpush.msra.mxu0 0.0
    %569 = vmatpush.msra.mxu0 0.0
    %570 = vmatpush.msra.mxu0 0.0
    %571 = vmatpush.msra.mxu0 0.0
    %572 = vmatpush.msra.mxu0 0.0
    %573 = vmatpush.msra.mxu0 %v60
    %574 = vmatpush.msra.mxu0 %v59
    %575 = vmatpush.msra.mxu0 %v58
    %576 = vmatpush.msra.mxu0 %v57
    %577 = vmatmul.f32.gmra.mxu0 %v559
    %v578 = vpop.f32.mrf.mxu0
    %v579 = vadd.f32 0.0, %v578
    %580 = vdwg.mxu0
    %v581 = vadd.f32 %v555, %v579
    %v582 = vxor.u32 %v581, 2147483648
    %v583 = vmul.f32 %v582, 1.442695
    %v584 = vpow.pop %v583
    %v585 = vadd.f32 %v584, 1.0
    %v586 = vrcp.pop %v585
    %v587 = vmul.f32 %v585, %v586
    %v588 = vsub.f32 1.0, %v587
    %v589 = vmul.f32 %v586, %v588
    %v590 = vadd.f32 %v586, %v589
    %vm591 = vweird.f32 %v585
    %vm592 = vweird.f32 %v586
    %vm593 = vmor %vm591, %vm592
    %v594 = vsel %vm593, %v586, %v590
    %v595 = vand.u32 2147483647, %v585
    %vm596 = vcmp.eq.f32.partialorder %v595, 8.507059e+37
    %v597 = vand.u32 %v585, 2147483648
    %v598 = vor.u32 1.1754944e-38, %v597
    %v599 = vsel %vm596, %v598, %v594
    %v600 = vmul.f32 1.0, %v599
    %v601 = vadd.f32 %v579, %v111
    %603 = vrot.lane.b32.xlu0 %v601, 64
    %v604 = vpop.permute.xlu0 %603
    %v606 = vmul.f32 %v600, %v604
    %608 = vrot.lane.b32.xlu0 %v606, 64
    %v609 = vpop.permute.xlu0 %608
    %v611 = vadd.f32 %v555, %v609
    %v612 = vtanh.pop %v611
    %v613 = vsub.f32 1.0, %v600
    %615 = vrot.lane.b32.xlu0 %v612, 96
    %v616 = vpop.permute.xlu0 %615
    %v618 = vmul.f32 %v613, %v616
    %v619 = vmul.f32 %v600, %v553
    %v620 = vadd.f32 %v618, %v619
    %vm621 = vcmp.gt.s32.totalorder %v56, 6
    %v622 = vsel %vm621, 1, 0
    %623 = vset.pattern.permute.xlu0 0
    %624 = vperm.xlu0 %623, %v622
    %v625 = vpop.permute.xlu0 %624
    %vm626 = vcmp.eq.s32.totalorder %v625, 1
    %v627 = vsel %vm626, %v620, 0.0
    %629 = vrot.lane.b32.xlu0 %v627, 96
    %v630 = vpop.permute.xlu0 %629
    %s632 = scalar_lea.vmem [#allocation7], 48
    %633 = vst.msk [vmem:[%s632] sm:$0xff] %vm66, %v630
    %v634 = vsel %vm626, %v620, %v553
    %s635 = scalar_lea.vmem [#allocation2], 56
    %v636 = vld [vmem:[%s635] sm:$0xff]
    %638 = vrot.lane.b32.xlu0 %v634, 96
    %v639 = vpop.permute.xlu0 %638
    %v640 = vsel %vm66, %v639, 0
    %642 = vmatpush.msra.mxu0 0.0
    %643 = vmatpush.msra.mxu0 0.0
    %644 = vmatpush.msra.mxu0 0.0
    %645 = vmatpush.msra.mxu0 0.0
    %646 = vmatpush.msra.mxu0 0.0
    %647 = vmatpush.msra.mxu0 0.0
    %648 = vmatpush.msra.mxu0 0.0
    %649 = vmatpush.msra.mxu0 0.0
    %650 = vmatpush.msra.mxu0 0.0
    %651 = vmatpush.msra.mxu0 0.0
    %652 = vmatpush.msra.mxu0 0.0
    %653 = vmatpush.msra.mxu0 0.0
    %654 = vmatpush.msra.mxu0 %v60
    %655 = vmatpush.msra.mxu0 %v59
    %656 = vmatpush.msra.mxu0 %v58
    %657 = vmatpush.msra.mxu0 %v57
    %658 = vmatmul.f32.gmra.mxu0 %v640
    %v659 = vpop.f32.mrf.mxu0
    %v660 = vadd.f32 0.0, %v659
    %661 = vdwg.mxu0
    %v662 = vadd.f32 %v636, %v660
    %v663 = vxor.u32 %v662, 2147483648
    %v664 = vmul.f32 %v663, 1.442695
    %v665 = vpow.pop %v664
    %v666 = vadd.f32 %v665, 1.0
    %v667 = vrcp.pop %v666
    %v668 = vmul.f32 %v666, %v667
    %v669 = vsub.f32 1.0, %v668
    %v670 = vmul.f32 %v667, %v669
    %v671 = vadd.f32 %v667, %v670
    %vm672 = vweird.f32 %v666
    %vm673 = vweird.f32 %v667
    %vm674 = vmor %vm672, %vm673
    %v675 = vsel %vm674, %v667, %v671
    %v676 = vand.u32 2147483647, %v666
    %vm677 = vcmp.eq.f32.partialorder %v676, 8.507059e+37
    %v678 = vand.u32 %v666, 2147483648
    %v679 = vor.u32 1.1754944e-38, %v678
    %v680 = vsel %vm677, %v679, %v675
    %v681 = vmul.f32 1.0, %v680
    %v682 = vadd.f32 %v660, %v111
    %684 = vrot.lane.b32.xlu0 %v682, 64
    %v685 = vpop.permute.xlu0 %684
    %v687 = vmul.f32 %v681, %v685
    %689 = vrot.lane.b32.xlu0 %v687, 64
    %v690 = vpop.permute.xlu0 %689
    %v692 = vadd.f32 %v636, %v690
    %v693 = vtanh.pop %v692
    %v694 = vsub.f32 1.0, %v681
    %696 = vrot.lane.b32.xlu0 %v693, 96
    %v697 = vpop.permute.xlu0 %696
    %v699 = vmul.f32 %v694, %v697
    %v700 = vmul.f32 %v681, %v634
    %v701 = vadd.f32 %v699, %v700
    %vm702 = vcmp.gt.s32.totalorder %v56, 7
    %v703 = vsel %vm702, 1, 0
    %704 = vset.pattern.permute.xlu0 0
    %705 = vperm.xlu0 %704, %v703
    %v706 = vpop.permute.xlu0 %705
    %vm707 = vcmp.eq.s32.totalorder %v706, 1
    %v708 = vsel %vm707, %v701, 0.0
    %710 = vrot.lane.b32.xlu0 %v708, 96
    %v711 = vpop.permute.xlu0 %710
    %s713 = scalar_lea.vmem [#allocation7], 56
    %714 = vst.msk [vmem:[%s713] sm:$0xff] %vm66, %v711
    %v715 = vsel %vm707, %v701, %v634
    %717 = vrot.lane.b32.xlu0 %v715, 96
    %v718 = vpop.permute.xlu0 %717
    %720 = vst.msk [vmem:[#allocation8] sm:$0xff] %vm66, %v718
    // Predicated region
    $region30: #{tpu_custom_call.1} parent=1 // pred_check
      _
    $region31: #{tpu_custom_call.1} parent=1 // pred_check_branch
      %722 = sbr.rel (0) target = $region33
    $region32: #{tpu_custom_call.1} parent=1 // pred_region
      %724 = vsyncadd [#allocation4], 0
      %s725 = sshll.u32 [#allocation7], 4
      %s726 = int_to_ptr.vmem [resolvable:$true] %s725
      %s727 = sshll.u32 %s5, 4
      %s728 = int_to_ptr.hbm [resolvable:$true] %s727
      %733 = dma.vmem_to_hbm [thread:$0]  %s726, 1024, %s728, [#allocation4], 128, 128, 8
    $region33: #{tpu_custom_call.1} parent=1 // pred_fallthru
      _
    // Predicated region
    $region34: #{tpu_custom_call.1} parent=1 // pred_check
      _
    $region35: #{tpu_custom_call.1} parent=1 // pred_check_branch
      %735 = sbr.rel (0) target = $region37
    $region36: #{tpu_custom_call.1} parent=1 // pred_region
      %737 = vsyncadd [#allocation9], 0
      %s739 = sshll.u32 [#allocation8], 4
      %s740 = int_to_ptr.vmem [resolvable:$true] %s739
      %s741 = sshll.u32 %s6, 4
      %s742 = int_to_ptr.hbm [resolvable:$true] %s741
      %744 = dma.vmem_to_hbm [thread:$0]  %s740, 128, %s742, [#allocation9]
    $region37: #{tpu_custom_call.1} parent=1 // pred_fallthru
      _
    // Predicated region
    $region38: #{tpu_custom_call.1} parent=1 // pred_check
      _
    $region39: #{tpu_custom_call.1} parent=1 // pred_check_branch
      %746 = sbr.rel (0) target = $region41
    $region40: #{tpu_custom_call.1} parent=1 // pred_region
      %748 = dma.done [#allocation4], 1024
    $region41: #{tpu_custom_call.1} parent=1 // pred_fallthru
      _
    // Predicated region
    $region42: #{tpu_custom_call.1} parent=1 // pred_check
      _
    $region43: #{tpu_custom_call.1} parent=1 // pred_check_branch
      %750 = sbr.rel (0) target = $region45
    $region44: #{tpu_custom_call.1} parent=1 // pred_region
      %752 = dma.done [#allocation9], 128
    $region45: #{tpu_custom_call.1} parent=1 // pred_fallthru
      _
    %753 = vsyncpa [#allocation3], 1
    %754 = vsyncpa [#allocation6], 1
    %755 = vsyncpa [#allocation4], 1
    %756 = vsyncpa [#allocation9], 1

</llo_original>
